<compile_context>
chip_gen: v7x
topology: tpu7x:2x2x1
jax: 0.10.0
libtpu: 0.0.40
codegen_flags: <defaults>
</compile_context>

<pallas_src>
import functools

import jax
import jax.numpy as jnp
from jax.experimental import pallas as pl
from jax.experimental.pallas import tpu as pltpu


def _contrastive_loss_kernel(out1_ref, vecs_ref, feat1_ref, scal_ref,
                             loss_ref, acc_ref, *,
                             n_valid, d_valid, tile_n, v, margin):
    """Grid = (B, N_tiles). Reduces sum_i ||out1 - vec_i + eps|| over N tiles,
    then applies the feat1 term, scaling, margin and hinge on the last tile."""
    b = pl.program_id(0)
    i = pl.program_id(1)
    n_tiles = pl.num_programs(1)

    eps = jnp.float32(1e-6)  # F.pairwise_distance default eps: ||x1 - x2 + eps||
    d_pad = vecs_ref.shape[1]
    n_pad = n_tiles * tile_n

    @pl.when(i == 0)
    def _init():
        acc_ref[...] = jnp.zeros_like(acc_ref)

    out1 = out1_ref[...]                         # (1, D_pad)
    vecs = vecs_ref[...]                         # (TILE_N, D_pad)

    diff = out1 - vecs                           # (TILE_N, D_pad)
    if d_valid == d_pad:                         # static python branch
        diff = diff + eps
    else:
        # +eps only on real feature lanes; padded lanes must be exactly 0.
        lane_ids = jax.lax.broadcasted_iota(jnp.int32, diff.shape, 1)
        diff = jnp.where(lane_ids < d_valid, diff + eps, jnp.float32(0.0))

    per_vec = jnp.sqrt(jnp.sum(diff * diff, axis=-1, keepdims=True))   # (TILE_N, 1)

    if n_valid != n_pad:                         # mask zero-padded anchor rows
        row_ids = (jax.lax.broadcasted_iota(jnp.int32, per_vec.shape, 0)
                   + i * tile_n)
        per_vec = jnp.where(row_ids < n_valid, per_vec, jnp.float32(0.0))

    acc_ref[...] += jnp.sum(per_vec, axis=0, keepdims=True)             # (1, 1)

    @pl.when(i == n_tiles - 1)
    def _finalize():
        label = scal_ref[b, 0]
        alpha = scal_ref[b, 1]

        dfeat = out1 - feat1_ref[...]                                   # (1, D_pad)
        if d_valid == d_pad:
            dfeat_m = dfeat + eps
        else:
            lane_ids_f = jax.lax.broadcasted_iota(jnp.int32, dfeat.shape, 1)
            dfeat_m = jnp.where(lane_ids_f < d_valid, dfeat + eps,
                                jnp.float32(0.0))
        feat_dist = jnp.sqrt(jnp.sum(dfeat_m * dfeat_m, axis=-1,
                                     keepdims=True))                    # (1, 1)

        # Fold 1/sqrt(D) (and 1/v when v > 0) into one scalar, applied once.
        scale = 1.0 / (float(d_valid) ** 0.5)
        if v > 0.0:                               # mirrors `if self.v > 0.0`
            scale = scale / float(v)

        ed = (acc_ref[...] + alpha * feat_dist) * jnp.float32(scale)    # (1, 1)
        marg = (jnp.float32(n_valid) + alpha) * jnp.float32(margin)
        hinge = jnp.maximum(jnp.float32(0.0), marg - ed)
        loss_ref[...] = ((jnp.float32(1.0) - label) * ed * ed * jnp.float32(0.5)
                         + label * hinge * hinge * jnp.float32(0.5))


def _round_up(x, m):
    return ((x + m - 1) // m) * m


def _choose_tile_n(n_rows, d_pad):
    """Row tile for the anchor matrix: multiple of 8, <= 512 rows, and the
    double-buffered tile stays ~<= 4 MiB so it is safe on every generation."""
    bytes_per_row = d_pad * 4
    cap_rows = max(8, (2 * 1024 * 1024) // bytes_per_row)
    cap_rows = max(8, (cap_rows // 8) * 8)
    tile = min(_round_up(n_rows, 8), 512, cap_rows)
    return max(8, (tile // 8) * 8)


def contrastive_loss_batched(output1, vectors, feat1, label, alpha, *,
                             v=0.0, margin=0.8):
    """Batched ContrastiveLoss: B independent (output1, feat1, label, alpha)
    instances share one (N, D) anchor matrix; returns (B,) float32 losses."""
    if isinstance(vectors, (list, tuple)):
        # Prefer passing a pre-stacked (N, D) array; stack once if given a list.
        vecs = jnp.stack([jnp.asarray(x, jnp.float32).reshape(-1)
                          for x in vectors], axis=0)
    else:
        vecs = jnp.asarray(vectors, jnp.float32)
        if vecs.ndim == 1:
            vecs = vecs[None, :]
    n_valid, d_valid = vecs.shape

    out1 = jnp.asarray(output1, jnp.float32).reshape(-1, d_valid)   # (B, D)
    f1 = jnp.asarray(feat1, jnp.float32).reshape(-1, d_valid)       # (B, D)
    batch = out1.shape[0]

    label_arr = jnp.broadcast_to(
        jnp.asarray(label, jnp.float32).reshape(-1), (batch,))
    alpha_arr = jnp.broadcast_to(
        jnp.asarray(alpha, jnp.float32).reshape(-1), (batch,))
    scal = jnp.stack([label_arr, alpha_arr], axis=-1)               # (B, 2) SMEM

    # Lane-dense padding: D -> multiple of 128, N -> multiple of the row tile.
    d_pad = max(128, _round_up(d_valid, 128))
    tile_n = _choose_tile_n(n_valid, d_pad)
    n_tiles = pl.cdiv(n_valid, tile_n)
    n_pad = n_tiles * tile_n

    if d_pad != d_valid:
        out1 = jnp.pad(out1, ((0, 0), (0, d_pad - d_valid)))
        f1 = jnp.pad(f1, ((0, 0), (0, d_pad - d_valid)))
        vecs = jnp.pad(vecs, ((0, 0), (0, d_pad - d_valid)))
    if n_pad != n_valid:
        vecs = jnp.pad(vecs, ((0, n_pad - n_valid), (0, 0)))

    out1_3d = out1[:, None, :]    # (B, 1, D_pad): sublane dim == full dim -> legal block
    f1_3d = f1[:, None, :]

    kernel = functools.partial(
        _contrastive_loss_kernel,
        n_valid=int(n_valid), d_valid=int(d_valid), tile_n=int(tile_n),
        v=float(v), margin=float(margin))

    flops = int(batch) * (3 * n_pad * d_pad + 3 * d_pad + 32)
    transcendentals = int(batch) * (n_pad + 1)                 # sqrt per row
    bytes_accessed = 4 * (batch * n_pad * d_pad + 2 * batch * d_pad
                          + 2 * batch + batch)
    cost = pl.CostEstimate(flops=flops, transcendentals=transcendentals,
                           bytes_accessed=bytes_accessed)

    loss = pl.pallas_call(
        kernel,
        out_shape=jax.ShapeDtypeStruct((batch, 1, 1), jnp.float32),
        grid=(batch, n_tiles),
        in_specs=[
            pl.BlockSpec((None, 1, d_pad), lambda b, i: (b, 0, 0)),   # output1
            pl.BlockSpec((tile_n, d_pad), lambda b, i: (i, 0)),       # anchors tile
            pl.BlockSpec((None, 1, d_pad), lambda b, i: (b, 0, 0)),   # feat1
            pl.BlockSpec(memory_space=pltpu.MemorySpace.SMEM),        # (label, alpha)
        ],
        out_specs=pl.BlockSpec((None, 1, 1), lambda b, i: (b, 0, 0)),
        scratch_shapes=[pltpu.VMEM((1, 1), jnp.float32)],             # ed accumulator
        compiler_params=pltpu.CompilerParams(
            dimension_semantics=("parallel", "arbitrary"),
            vmem_limit_bytes=32 * 1024 * 1024),
        cost_estimate=cost,
    )(out1_3d, vecs, f1_3d, scal)

    return loss.reshape(batch)


def contrastive_loss(output1, vectors, feat1, label, alpha, *, v=0.0, margin=0.8):
    """JAX/Pallas equivalent of ContrastiveLoss.forward (single instance).

    output1: (1, D); vectors: (N, D) array or list of N (1, D)/(D,) arrays;
    feat1: (1, D); label, alpha: scalars. Returns a shape-(1,) float32 loss.
    """
    loss = contrastive_loss_batched(output1, vectors, feat1, label, alpha,
                                    v=v, margin=margin)
    return loss.reshape(1)


def _reference_single(output1, vectors, feat1, label, alpha, v=0.0, margin=0.8):
    d = output1.shape[1]
    inv_sqrt_d = 1.0 / jnp.sqrt(jnp.float32(d))
    ed = jnp.float32(0.0)
    for i in range(vectors.shape[0]):
        ed = ed + jnp.sqrt(jnp.sum((output1 - vectors[i] + 1e-6) ** 2)) * inv_sqrt_d
    ed = ed + alpha * jnp.sqrt(jnp.sum((output1 - feat1 + 1e-6) ** 2)) * inv_sqrt_d
    marg = (vectors.shape[0] + alpha) * margin
    if v > 0.0:
        ed = ed / v
    hinge = jnp.maximum(jnp.float32(0.0), marg - ed)
    return (1.0 - label) * ed ** 2 * 0.5 + label * hinge ** 2 * 0.5


if __name__ == "__main__":
    key = jax.random.PRNGKey(0)
    D = 32   # feature dim of output1 (output1.size()[1])
    N = 8    # number of anchor vectors in `vectors`
    B = 4    # batch of loss instances for the amortized path

    k1, k2, k3, k4, k5 = jax.random.split(key, 5)
    vectors = jax.random.normal(k2, (N, D), dtype=jnp.float32)   # pre-stacked anchors

    # 1) Single instance — exactly the module's forward semantics.
    output1 = jax.random.normal(k1, (1, D), dtype=jnp.float32)
    feat1 = jax.random.normal(k3, (1, D), dtype=jnp.float32)
    label = jnp.float32(1.0)   # "different class" branch exercises the hinge term
    alpha = jnp.float32(0.5)

    loss = contrastive_loss(output1, vectors, feat1, label, alpha, v=0.0, margin=0.8)
    loss = jax.block_until_ready(loss)
    ref = _reference_single(output1, vectors, feat1, label, alpha, v=0.0, margin=0.8)
    assert loss.shape == (1,)
    assert jnp.allclose(loss[0], ref, atol=1e-5, rtol=1e-5), (loss, ref)

    # 2) Batched call — amortizes the fixed launch/DMA overhead over B instances.
    out_b = jax.random.normal(k4, (B, D), dtype=jnp.float32)
    feat_b = jax.random.normal(k5, (B, D), dtype=jnp.float32)
    label_b = jnp.array([0.0, 1.0, 1.0, 0.0], jnp.float32)
    alpha_b = jnp.array([0.5, 0.25, 1.0, 0.0], jnp.float32)

    loss_b = contrastive_loss_batched(out_b, vectors, feat_b, label_b, alpha_b,
                                      v=2.0, margin=0.8)
    loss_b = jax.block_until_ready(loss_b)
    assert loss_b.shape == (B,)
    for i in range(B):
        ref_i = _reference_single(out_b[i:i + 1], vectors, feat_b[i:i + 1],
                                  label_b[i], alpha_b[i], v=2.0, margin=0.8)
        assert jnp.allclose(loss_b[i], ref_i, atol=1e-5, rtol=1e-5), (i, loss_b[i], ref_i)

    print("KERNEL_OK")
</pallas_src>

<mosaic_0001>
module attributes {stable_mosaic.version = 11 : i64} {
  func.func @_contrastive_loss_kernel(%arg0: i32, %arg1: i32, %arg2: memref<1x1x128xf32, #tpu.memory_space<vmem>>, %arg3: memref<8x128xf32, #tpu.memory_space<vmem>>, %arg4: memref<1x1x128xf32, #tpu.memory_space<vmem>>, %arg5: memref<1x2xf32, #tpu.memory_space<smem>>, %arg6: memref<1x1x1xf32, #tpu.memory_space<vmem>>, %arg7: memref<1x1xf32, #tpu.memory_space<vmem>>) attributes {dimension_semantics = [#tpu.dimension_semantics<parallel>, #tpu.dimension_semantics<arbitrary>], iteration_bounds = array<i64: 1, 1>, scalar_prefetch = 0 : i64, scratch_operands = 1 : i64, tpu.core_type = #tpu.core_type<tc>, window_params = [{transform_indices = @transform_0, window_bounds = array<i64: 1, 1, 128>}, {transform_indices = @transform_1, window_bounds = array<i64: 8, 128>}, {transform_indices = @transform_2, window_bounds = array<i64: 1, 1, 128>}, {transform_indices = @transform_3, window_bounds = array<i64: 1, 2>}, {transform_indices = @transform_4, window_bounds = array<i64: 1, 1, 1>}]} {
    %c0_i32 = arith.constant 0 : i32
    %0 = arith.cmpi eq, %arg1, %c0_i32 : i32
    %1 = arith.extui %0 : i1 to i32
    %c0_i32_0 = arith.constant 0 : i32
    %2 = arith.cmpi ne, %1, %c0_i32_0 : i32
    scf.if %2 {
      %cst_15 = arith.constant 0.000000e+00 : f32
      %27 = vector.broadcast %cst_15 : f32 to vector<1x1xf32>
      %c0_16 = arith.constant 0 : index
      %c0_17 = arith.constant 0 : index
      %28 = vector.load %arg7[%c0_16, %c0_17] : memref<1x1xf32, #tpu.memory_space<vmem>>, vector<1x1xf32>
      tpu.vector_store %arg7[%c0_16, %c0_17], %27 {strides = array<i32>} : memref<1x1xf32, #tpu.memory_space<vmem>>, vector<1x1xf32>,
    } else {
    }
    %c0 = arith.constant 0 : index
    %c0_1 = arith.constant 0 : index
    %c0_2 = arith.constant 0 : index
    %3 = vector.load %arg2[%c0, %c0_1, %c0_2] : memref<1x1x128xf32, #tpu.memory_space<vmem>>, vector<1x1x128xf32>
    %4 = vector.shape_cast %3 : vector<1x1x128xf32> to vector<1x128xf32>
    %c0_3 = arith.constant 0 : index
    %c0_4 = arith.constant 0 : index
    %5 = vector.load %arg3[%c0_3, %c0_4] : memref<8x128xf32, #tpu.memory_space<vmem>>, vector<8x128xf32>
    %6 = vector.broadcast %4 : vector<1x128xf32> to vector<8x128xf32>
    %7 = arith.subf %6, %5 : vector<8x128xf32>
    %8 = tpu.iota {dimensions = array<i32: 1>} : vector<8x128xi32>
    %c32_i32 = arith.constant 32 : i32
    %9 = vector.broadcast %c32_i32 : i32 to vector<8x128xi32>
    %10 = arith.cmpi slt, %8, %9 : vector<8x128xi32>
    %cst = arith.constant 9.99999997E-7 : f32
    %11 = vector.broadcast %cst : f32 to vector<8x128xf32>
    %12 = arith.addf %7, %11 : vector<8x128xf32>
    %cst_5 = arith.constant 0.000000e+00 : f32
    %13 = vector.broadcast %cst_5 : f32 to vector<8x128xf32>
    %14 = arith.select %10, %12, %13 : vector<8x128xi1>, vector<8x128xf32>
    %15 = arith.mulf %14, %14 : vector<8x128xf32>
    %cst_6 = arith.constant dense<0.000000e+00> : vector<8xf32>
    %16 = vector.multi_reduction <add>, %15, %cst_6 [1] : vector<8x128xf32> to vector<8xf32>
    %17 = vector.shape_cast %16 : vector<8xf32> to vector<8x1xf32>
    %18 = math.sqrt %17 : vector<8x1xf32>
    %c0_7 = arith.constant 0 : index
    %c0_8 = arith.constant 0 : index
    %19 = vector.load %arg7[%c0_7, %c0_8] : memref<1x1xf32, #tpu.memory_space<vmem>>, vector<1x1xf32>
    %cst_9 = arith.constant dense<0.000000e+00> : vector<1xf32>
    %20 = vector.multi_reduction <add>, %18, %cst_9 [0] : vector<8x1xf32> to vector<1xf32>
    %21 = vector.shape_cast %20 : vector<1xf32> to vector<1x1xf32>
    %22 = arith.addf %19, %21 : vector<1x1xf32>
    %c0_10 = arith.constant 0 : index
    %c0_11 = arith.constant 0 : index
    %23 = vector.load %arg7[%c0_10, %c0_11] : memref<1x1xf32, #tpu.memory_space<vmem>>, vector<1x1xf32>
    tpu.vector_store %arg7[%c0_10, %c0_11], %22 {strides = array<i32>} : memref<1x1xf32, #tpu.memory_space<vmem>>, vector<1x1xf32>,
    %c0_i32_12 = arith.constant 0 : i32
    %24 = arith.cmpi eq, %arg1, %c0_i32_12 : i32
    %25 = arith.extui %24 : i1 to i32
    %cst_13 = arith.constant 9.99999997E-7 : f32
    %c0_i32_14 = arith.constant 0 : i32
    %26 = arith.cmpi ne, %25, %c0_i32_14 : i32
    scf.if %26 {
      %27 = arith.index_cast %arg0 : i32 to index
      %c0_15 = arith.constant 0 : index
      %28 = memref.load %arg5[%27, %c0_15] : memref<1x2xf32, #tpu.memory_space<smem>>
      %29 = arith.index_cast %arg0 : i32 to index
      %c1 = arith.constant 1 : index
      %30 = memref.load %arg5[%29, %c1] : memref<1x2xf32, #tpu.memory_space<smem>>
      %c0_16 = arith.constant 0 : index
      %c0_17 = arith.constant 0 : index
      %c0_18 = arith.constant 0 : index
      %31 = vector.load %arg4[%c0_16, %c0_17, %c0_18] : memref<1x1x128xf32, #tpu.memory_space<vmem>>, vector<1x1x128xf32>
      %32 = vector.shape_cast %31 : vector<1x1x128xf32> to vector<1x128xf32>
      %33 = arith.subf %4, %32 : vector<1x128xf32>
      %34 = tpu.iota {dimensions = array<i32: 1>} : vector<1x128xi32>
      %c32_i32_19 = arith.constant 32 : i32
      %35 = vector.broadcast %c32_i32_19 : i32 to vector<1x128xi32>
      %36 = arith.cmpi slt, %34, %35 : vector<1x128xi32>
      %37 = vector.broadcast %cst_13 : f32 to vector<1x128xf32>
      %38 = arith.addf %33, %37 : vector<1x128xf32>
      %cst_20 = arith.constant 0.000000e+00 : f32
      %39 = vector.broadcast %cst_20 : f32 to vector<1x128xf32>
      %40 = arith.select %36, %38, %39 : vector<1x128xi1>, vector<1x128xf32>
      %41 = arith.mulf %40, %40 : vector<1x128xf32>
      %cst_21 = arith.constant dense<0.000000e+00> : vector<1xf32>
      %42 = vector.multi_reduction <add>, %41, %cst_21 [1] : vector<1x128xf32> to vector<1xf32>
      %43 = vector.shape_cast %42 : vector<1xf32> to vector<1x1xf32>
      %44 = math.sqrt %43 : vector<1x1xf32>
      %c0_22 = arith.constant 0 : index
      %c0_23 = arith.constant 0 : index
      %45 = vector.load %arg7[%c0_22, %c0_23] : memref<1x1xf32, #tpu.memory_space<vmem>>, vector<1x1xf32>
      %46 = vector.broadcast %30 : f32 to vector<1x1xf32>
      %47 = arith.mulf %46, %44 : vector<1x1xf32>
      %48 = arith.addf %45, %47 : vector<1x1xf32>
      %cst_24 = arith.constant 0.176776692 : f32
      %49 = vector.broadcast %cst_24 : f32 to vector<1x1xf32>
      %50 = arith.mulf %48, %49 : vector<1x1xf32>
      %cst_25 = arith.constant 8.000000e+00 : f32
      %51 = arith.addf %cst_25, %30 : f32
      %cst_26 = arith.constant 8.000000e-01 : f32
      %52 = arith.mulf %51, %cst_26 : f32
      %53 = vector.broadcast %52 : f32 to vector<1x1xf32>
      %54 = arith.subf %53, %50 : vector<1x1xf32>
      %cst_27 = arith.constant 0.000000e+00 : f32
      %55 = vector.broadcast %cst_27 : f32 to vector<1x1xf32>
      %56 = arith.maximumf %55, %54 : vector<1x1xf32>
      %cst_28 = arith.constant 1.000000e+00 : f32
      %57 = arith.subf %cst_28, %28 : f32
      %58 = vector.broadcast %57 : f32 to vector<1x1xf32>
      %59 = arith.mulf %58, %50 : vector<1x1xf32>
      %60 = arith.mulf %59, %50 : vector<1x1xf32>
      %cst_29 = arith.constant 5.000000e-01 : f32
      %61 = vector.broadcast %cst_29 : f32 to vector<1x1xf32>
      %62 = arith.mulf %60, %61 : vector<1x1xf32>
      %63 = vector.broadcast %28 : f32 to vector<1x1xf32>
      %64 = arith.mulf %63, %56 : vector<1x1xf32>
      %65 = arith.mulf %64, %56 : vector<1x1xf32>
      %cst_30 = arith.constant 5.000000e-01 : f32
      %66 = vector.broadcast %cst_30 : f32 to vector<1x1xf32>
      %67 = arith.mulf %65, %66 : vector<1x1xf32>
      %68 = arith.addf %62, %67 : vector<1x1xf32>
      %c0_31 = arith.constant 0 : index
      %c0_32 = arith.constant 0 : index
      %c0_33 = arith.constant 0 : index
      %69 = vector.load %arg6[%c0_31, %c0_32, %c0_33] : memref<1x1x1xf32, #tpu.memory_space<vmem>>, vector<1x1x1xf32>
      %70 = vector.shape_cast %69 : vector<1x1x1xf32> to vector<1x1xf32>
      %71 = vector.shape_cast %68 : vector<1x1xf32> to vector<1x1x1xf32>
      tpu.vector_store %arg6[%c0_31, %c0_32, %c0_33], %71 {strides = array<i32>} : memref<1x1x1xf32, #tpu.memory_space<vmem>>, vector<1x1x1xf32>,
    } else {
    }
    return
  }
  func.func @transform_0(%arg0: i32, %arg1: i32) -> (i32, i32, i32) {
    %c0_i32 = arith.constant 0 : i32
    %c0_i32_0 = arith.constant 0 : i32
    %c0_i32_1 = arith.constant 0 : i32
    return %arg0, %c0_i32, %c0_i32_0 : i32, i32, i32
  }
  func.func @transform_1(%arg0: i32, %arg1: i32) -> (i32, i32) {
    %c0_i32 = arith.constant 0 : i32
    %c0_i32_0 = arith.constant 0 : i32
    return %arg1, %c0_i32 : i32, i32
  }
  func.func @transform_2(%arg0: i32, %arg1: i32) -> (i32, i32, i32) {
    %c0_i32 = arith.constant 0 : i32
    %c0_i32_0 = arith.constant 0 : i32
    %c0_i32_1 = arith.constant 0 : i32
    return %arg0, %c0_i32, %c0_i32_0 : i32, i32, i32
  }
  func.func @transform_3(%arg0: i32, %arg1: i32) -> (i32, i32) {
    %c0_i32 = arith.constant 0 : i32
    %c0_i32_0 = arith.constant 0 : i32
    %c0_i32_1 = arith.constant 0 : i32
    return %c0_i32, %c0_i32_0 : i32, i32
  }
  func.func @transform_4(%arg0: i32, %arg1: i32) -> (i32, i32, i32) {
    %c0_i32 = arith.constant 0 : i32
    %c0_i32_0 = arith.constant 0 : i32
    %c0_i32_1 = arith.constant 0 : i32
    return %arg0, %c0_i32, %c0_i32_0 : i32, i32, i32
  }
}

</mosaic_0001>

<llo_original>
// kernel: tpu_custom_call.1
$region0: #{tpu_custom_call.1}
  #allocation0 [shape = 'u32[]', space=smem, size = 0x4, offset = 0x4, fixed_abs, tag = 'smem constant byte address 0x4 - core index']
  #allocation1 [shape = 'u32[144,128]{1,0:T(1,128)}', space=vmem, size = 0x12000, scoped, tag = 'internal scratch']
  #allocation2 [shape = 'f32[1,1]{1,0:T(1,128)}', space=vmem, size = 0x200, scoped, tag = 'scratch operand']
  %s0 = inlined_call_operand.hbm [shape: f32[1,1,128], index: 0, kind: input, shape index: {}]
  %s1 = inlined_call_operand.hbm [shape: f32[8,128], index: 1, kind: input, shape index: {}]
  %s2 = inlined_call_operand.vmem [shape: f32[1,1,128], index: 2, kind: input, shape index: {}]
  %s3 = inlined_call_operand.vmem [shape: f32[1,2], index: 3, kind: input, shape index: {}]
  %s4 = inlined_call_operand.hbm [shape: f32[1,1,1], index: 4, kind: output, shape index: {}]
  %s5 = sld [smem:[#allocation0]]
  $region46: #{tpu_custom_call.1} parent=0
    _
  %s7 = ssub.s32 1, %s5
  %s8 = scalar_select 0, %s7, %s5
  $region1: #{tpu_custom_call.1} parent=0
    #allocation3 [shape = 'u8[512]{0}', space=vmem, size = 0x400, scoped, tag = 'input window, operand 0, single buffered']
    #allocation4 [shape = 's32[1]{0}', space=sflag, size = 0x4, scoped, tag = 'scoped memory for tpu_custom_call.1']
    #allocation5 [shape = 's32[1]{0}', space=sflag, size = 0x4, scoped, tag = 'scoped memory for tpu_custom_call.1']
    #allocation6 [shape = 's32[1]{0}', space=sflag, size = 0x4, scoped, tag = 'scoped memory for tpu_custom_call.1']
    #allocation7 [shape = 'u8[4096]{0}', space=vmem, size = 0x1000, scoped, tag = 'input window, operand 1, single buffered']
    #allocation8 [shape = 's32[1]{0}', space=sflag, size = 0x4, scoped, tag = 'scoped memory for tpu_custom_call.1']
    #allocation9 [shape = 'u8[512]{0}', space=smem, size = 0x200, scoped, tag = 'input window, operand 3, single buffered']
    #allocation10 [shape = 'u8[512]{0}', space=vmem, size = 0x400, scoped, tag = 'output window, operand 0, single buffered']
    %9 = vsyncpa [#allocation4], 0
    %10 = vsyncpa [#allocation8], 0
    %11 = vsyncpa [#allocation6], 0
    %12 = vsyncpa [#allocation5], 0
    // Predicated region
    $region2: #{tpu_custom_call.1} parent=1 // pred_check
      _
    $region3: #{tpu_custom_call.1} parent=1 // pred_check_branch
      %14 = sbr.rel (0) target = $region5
    $region4: #{tpu_custom_call.1} parent=1 // pred_region
      %s16 = ssub.s32 16, 16
      %17 = vsyncadd [#allocation4], %s16
      %s19 = sshll.u32 [#allocation3], 4
      %s20 = int_to_ptr.vmem [resolvable:$true] %s19
      %22 = dma.hbm_to_vmem [thread:$0]  %s0, 16, %s20, [#allocation4]
    $region5: #{tpu_custom_call.1} parent=1 // pred_fallthru
      _
    // Predicated region
    $region6: #{tpu_custom_call.1} parent=1 // pred_check
      _
    $region7: #{tpu_custom_call.1} parent=1 // pred_check_branch
      %24 = sbr.rel (0) target = $region9
    $region8: #{tpu_custom_call.1} parent=1 // pred_region
      %s26 = ssub.s32 128, 128
      %27 = vsyncadd [#allocation8], %s26
      %s29 = sshll.u32 [#allocation7], 4
      %s30 = int_to_ptr.vmem [resolvable:$true] %s29
      %32 = dma.hbm_to_vmem [thread:$0]  %s1, 128, %s30, [#allocation8]
    $region9: #{tpu_custom_call.1} parent=1 // pred_fallthru
      _
    // Predicated region
    $region10: #{tpu_custom_call.1} parent=1 // pred_check
      _
    $region11: #{tpu_custom_call.1} parent=1 // pred_check_branch
      %34 = sbr.rel (0) target = $region13
    $region12: #{tpu_custom_call.1} parent=1 // pred_region
      _
    $region13: #{tpu_custom_call.1} parent=1 // pred_fallthru
      _
    // Predicated region
    $region14: #{tpu_custom_call.1} parent=1 // pred_check
      _
    $region15: #{tpu_custom_call.1} parent=1 // pred_check_branch
      %36 = sbr.rel (0) target = $region17
    $region16: #{tpu_custom_call.1} parent=1 // pred_region
      %s38 = ssub.s32 16, 16
      %39 = vsyncadd [#allocation6], %s38
      %s41 = sshll.u32 %s3, 4
      %s42 = int_to_ptr.vmem [resolvable:$true] %s41
      %44 = dma.vmem_to_smem %s42, 16, [#allocation9], [#allocation6]
    $region17: #{tpu_custom_call.1} parent=1 // pred_fallthru
      _
    // Predicated region
    $region18: #{tpu_custom_call.1} parent=1 // pred_check
      _
    $region19: #{tpu_custom_call.1} parent=1 // pred_check_branch
      %46 = sbr.rel (0) target = $region21
    $region20: #{tpu_custom_call.1} parent=1 // pred_region
      %47 = dma.done [#allocation4], 16
    $region21: #{tpu_custom_call.1} parent=1 // pred_fallthru
      _
    // Predicated region
    $region22: #{tpu_custom_call.1} parent=1 // pred_check
      _
    $region23: #{tpu_custom_call.1} parent=1 // pred_check_branch
      %49 = sbr.rel (0) target = $region25
    $region24: #{tpu_custom_call.1} parent=1 // pred_region
      %50 = dma.done [#allocation8], 128
    $region25: #{tpu_custom_call.1} parent=1 // pred_fallthru
      _
    // Predicated region
    $region26: #{tpu_custom_call.1} parent=1 // pred_check
      _
    $region27: #{tpu_custom_call.1} parent=1 // pred_check_branch
      %52 = sbr.rel (0) target = $region29
    $region28: #{tpu_custom_call.1} parent=1 // pred_region
      %53 = dma.done [#allocation6], 16
    $region29: #{tpu_custom_call.1} parent=1 // pred_fallthru
      _
    %54 = sfence
    %p55 = scmp.eq.s32.totalorder 0, 0
    // Predicated region
    $region30: #{tpu_custom_call.1} parent=1 // pred_check
      %p56 = pneg %p55
    $region31: #{tpu_custom_call.1} parent=1 // pred_check_branch
      %58 = sbr.rel (%p56) target = $region33
    $region32: #{tpu_custom_call.1} parent=1 // pred_region
      %vm59 = vcmask 0
      %60 = vst.msk [vmem:[#allocation2] sm:$0x1] %vm59, 0.0
    $region33: #{tpu_custom_call.1} parent=1 // pred_fallthru
      _
    %v61 = vld [vmem:[#allocation3] sm:$0x1]
    %v62 = vld [vmem:[#allocation7] sm:$0xff]
    %v64 = vlaneseq
    %v65 = vshrl.u32 %v64, 7
    %v66 = vsub.s32 0, %v65
    %v67 = vrot.slane %v61, %v66
    %v69 = vsub.f32 %v67, %v62
    %v70 = vlaneseq
    %v71 = vand.u32 %v70, 127
    %vm72 = vcmp.lt.s32.totalorder %v71, 32
    %v73 = vadd.f32 %v69, 1e-06
    %v74 = vsel %vm72, %v73, 0.0
    %v75 = vmul.f32 %v74, %v74
    %76 = vadd.xlane.f32.xlu0 %v75
    %v77 = vpop.xlane.xlu0 %76
    %v78 = vrsqrt.pop %v77
    %v79 = vmul.f32 %v77, %v78
    %vm80 = vcmp.eq.f32.partialorder %v77, inf
    %v81 = vsel %vm80, %v77, %v79
    %vm82 = vcmp.eq.f32.partialorder %v77, 0.0
    %v83 = vand.u32 %v77, 2147483648
    %v84 = vsel %vm82, %v83, %v81
    %v85 = vld [vmem:[#allocation2] sm:$0x1]
    %v86 = vrot.slane %v84, 4
    %v87 = vadd.f32 %v84, %v86
    %v88 = vrot.slane %v87, 2
    %v89 = vadd.f32 %v87, %v88
    %v90 = vrot.slane %v89, 1
    %v91 = vadd.f32 %v89, %v90
    %v92 = vadd.f32 %v85, %v91
    %vm93 = vcmask 0
    %94 = vst.msk [vmem:[#allocation2] sm:$0x1] %vm93, %v92
    // Predicated region
    $region34: #{tpu_custom_call.1} parent=1 // pred_check
      %p95 = pneg %p55
    $region35: #{tpu_custom_call.1} parent=1 // pred_check_branch
      %97 = sbr.rel (%p95) target = $region37
    $region36: #{tpu_custom_call.1} parent=1 // pred_region
      %s98 = smul.u32 0, 128
      %s99 = sld [smem:[#allocation9 + %s98]]
      %s100 = sadd.s32 %s98, 1
      %s101 = sld [smem:[#allocation9 + %s100]]
      %v102 = vld [vmem:[%s2] sm:$0x1]
      %v103 = vsub.f32 %v61, %v102
      %v104 = vadd.f32 %v103, 1e-06
      %v105 = vsel %vm72, %v104, 0.0
      %v106 = vmul.f32 %v105, %v105
      %vm107 = vcmask 1040384
      %v108 = vsel %vm107, %v106, 0.0
      %109 = vadd.xlane.f32.xlu0 %v108
      %v110 = vpop.xlane.xlu0 %109
      %v111 = vrsqrt.pop %v110
      %v112 = vmul.f32 %v110, %v111
      %vm113 = vcmp.eq.f32.partialorder %v110, inf
      %v114 = vsel %vm113, %v110, %v112
      %vm115 = vcmp.eq.f32.partialorder %v110, 0.0
      %v116 = vand.u32 %v110, 2147483648
      %v117 = vsel %vm115, %v116, %v114
      %v118 = vld [vmem:[#allocation2] sm:$0x1]
      %v119 = vstv %s101
      %v120 = vmul.f32 %v119, %v117
      %v121 = vadd.f32 %v118, %v120
      %v122 = vmul.f32 %v121, 0.17677669
      %s123 = sadd.f32 %s101, 8.0
      %s124 = smul.f32 %s123, 0.8
      %v125 = vstv %s124
      %v126 = vsub.f32 %v125, %v122
      %v127 = vmax.f32 %v126, 0.0
      %s128 = ssub.f32 1.0, %s99
      %v129 = vstv %s128
      %v130 = vmul.f32 %v129, %v122
      %v131 = vmul.f32 %v130, %v122
      %v132 = vmul.f32 %v131, 0.5
      %v133 = vstv %s99
      %v134 = vmul.f32 %v133, %v127
      %v135 = vmul.f32 %v134, %v127
      %v136 = vmul.f32 %v135, 0.5
      %v137 = vadd.f32 %v132, %v136
      %138 = vst.msk [vmem:[#allocation10] sm:$0x1] %vm93, %v137
    $region37: #{tpu_custom_call.1} parent=1 // pred_fallthru
      _
    // Predicated region
    $region38: #{tpu_custom_call.1} parent=1 // pred_check
      _
    $region39: #{tpu_custom_call.1} parent=1 // pred_check_branch
      %140 = sbr.rel (0) target = $region41
    $region40: #{tpu_custom_call.1} parent=1 // pred_region
      %s142 = ssub.s32 16, 16
      %143 = vsyncadd [#allocation5], %s142
      %s145 = sshll.u32 [#allocation10], 4
      %s146 = int_to_ptr.vmem [resolvable:$true] %s145
      %148 = dma.vmem_to_hbm [thread:$0]  %s146, 16, %s4, [#allocation5]
    $region41: #{tpu_custom_call.1} parent=1 // pred_fallthru
      _
    // Predicated region
    $region42: #{tpu_custom_call.1} parent=1 // pred_check
      _
    $region43: #{tpu_custom_call.1} parent=1 // pred_check_branch
      %150 = sbr.rel (0) target = $region45
    $region44: #{tpu_custom_call.1} parent=1 // pred_region
      %151 = dma.done [#allocation5], 16
    $region45: #{tpu_custom_call.1} parent=1 // pred_fallthru
      _
    %152 = vsyncpa [#allocation4], 1
    %153 = vsyncpa [#allocation8], 1
    %154 = vsyncpa [#allocation5], 1
    %155 = vsyncpa [#allocation6], 1

</llo_original>
